<compile_context>
chip_gen: v6e
topology: v6e:2x2x1
jax: 0.10.0
libtpu: 0.0.40
codegen_flags: <defaults>
</compile_context>

<pallas_src>
import functools

import jax
import jax.numpy as jnp
from jax.experimental import pallas as pl
from jax.experimental.pallas import tpu as pltpu


# Lane columns per HW tile.  Per-step patch block = b_blk(<=8) * 32 * tile * 2 B
# = 2 MiB at 4096 -> 4 MiB double-buffered + ~2 MiB f32 temps: comfortably inside
# the scoped-VMEM budget on v5e/v6e (128 MiB phys) and v7x (64 MiB phys).
HW_TILE_TARGET = 4096


# ------------------------------ Pallas kernel --------------------------------

def _nr_metric_kernel(patches_ref, w1t_ref, w2_ref, out_ref, acc_ref,
                      *, inv_hw, b2):
    """Fused conv3x3-as-matmul (+bias via ones-tap) + ReLU + global-avg-pool
    + linear head, accumulated over HW tiles.

    patches_ref: (Bblk, 32, THW) bf16  im2col taps (27 conv + 1 bias tap, padded
                                       to 32 sublanes); spatial positions on lanes
    w1t_ref:     (C, 32)         bf16  conv weight (+ bias row) transposed
    w2_ref:      (1, C)          f32   linear head weight
    out_ref:     (Bblk, 128)     f32   per-image score broadcast along lanes
    acc_ref:     (Bblk, C)       f32   per-image channel sums (VMEM scratch)
    """
    hw_idx = pl.program_id(1)

    @pl.when(hw_idx == 0)
    def _init():
        acc_ref[...] = jnp.zeros_like(acc_ref)

    w1t = w1t_ref[...]                                       # (C, 32) bf16
    b_blk = patches_ref.shape[0]
    for b in range(b_blk):                                   # static unroll (<= 8)
        # (C, 32) x (32, THW) on the MXU with f32 accumulation.  Bias is already
        # folded in through the constant ones-tap; zero-padded HW columns give
        # exactly 0 after ReLU, so no masking is needed for the pool.
        h = jnp.dot(w1t, patches_ref[b],
                    preferred_element_type=jnp.float32)      # (C, THW) f32
        h = jnp.maximum(h, 0.0)                              # ReLU (VPU)
        acc_ref[b, :] += jnp.sum(h, axis=1)                  # lane-dense reduce -> (C,)

    @pl.when(hw_idx == pl.num_programs(1) - 1)
    def _finalize():
        pooled = acc_ref[...] * inv_hw                       # global avg pool (Bblk, C)
        score = jnp.sum(pooled * w2_ref[...], axis=1) + b2   # linear head -> (Bblk,)
        out_ref[...] = jnp.broadcast_to(score[:, None], out_ref.shape)


def _run_nr_metric(patches, w1t, w2, *, hw_real, b2, b_blk, hw_tile):
    b_pad, k_sub, hwp = patches.shape
    c = w1t.shape[0]
    n_b = b_pad // b_blk
    n_hw = hwp // hw_tile
    kernel = functools.partial(_nr_metric_kernel, inv_hw=1.0 / hw_real, b2=b2)
    out = pl.pallas_call(
        kernel,
        out_shape=jax.ShapeDtypeStruct((b_pad, 128), jnp.float32),
        grid=(n_b, n_hw),
        in_specs=[
            pl.BlockSpec((b_blk, k_sub, hw_tile), lambda b, h: (b, 0, h)),
            pl.BlockSpec((c, k_sub), lambda b, h: (0, 0)),   # weights fetched once
            pl.BlockSpec((1, c), lambda b, h: (0, 0)),
        ],
        out_specs=pl.BlockSpec((b_blk, 128), lambda b, h: (b, 0)),
        scratch_shapes=[pltpu.VMEM((b_blk, c), jnp.float32)],
        compiler_params=pltpu.CompilerParams(
            dimension_semantics=("parallel", "arbitrary"),
            vmem_limit_bytes=48 * 1024 * 1024,   # explicit; fits v5e/v6e/v7x budgets
        ),
    )(patches, w1t, w2)
    return out[:, 0]                                          # (b_pad,) scores


# ------------------------------- JAX glue -------------------------------------

def _im2col_bias_slab(x_nhwc, k, k_sub, hwp):
    """3x3 / stride 1 / pad 1 patches -> (B, 32, HWp) bf16.

    K layout: 27 conv taps (tap-major, cin-minor) + 1 constant ones-tap (bias),
    zero-padded to 32 sublanes.  HW zero-padded to hwp lanes (padded columns
    carry a zero bias tap too, so they contribute exactly 0 post-ReLU).
    """
    B, H, W, C = x_nhwc.shape
    HW = H * W
    xp = jnp.pad(x_nhwc, ((0, 0), (1, 1), (1, 1), (0, 0)))
    taps = [xp[:, dy:dy + H, dx:dx + W, :] for dy in range(k) for dx in range(k)]
    p = jnp.stack(taps, axis=3).reshape(B, HW, k * k * C)             # (B, HW, 27)
    p = jnp.concatenate([p, jnp.ones((B, HW, 1), p.dtype)], axis=-1)  # + bias tap
    p = jnp.pad(p, ((0, 0), (0, 0), (0, k_sub - p.shape[-1])))        # K -> 32
    p = jnp.transpose(p, (0, 2, 1))                                   # (B, 32, HW)
    p = jnp.pad(p, ((0, 0), (0, 0), (0, hwp - HW)))                   # HW -> hwp
    return p.astype(jnp.bfloat16)


@functools.partial(jax.jit,
                   static_argnames=("k", "k_sub", "hwp", "hw_tile",
                                    "b_blk", "b_pad", "hw_real", "b2"))
def _nr_forward(x_nhwc, w1t, w2, *, k, k_sub, hwp, hw_tile, b_blk, b_pad,
                hw_real, b2):
    B = x_nhwc.shape[0]
    patches = _im2col_bias_slab(x_nhwc, k, k_sub, hwp)
    if b_pad > B:
        patches = jnp.pad(patches, ((0, b_pad - B), (0, 0), (0, 0)))
    scores = _run_nr_metric(patches, w1t, w2, hw_real=hw_real, b2=b2,
                            b_blk=b_blk, hw_tile=hw_tile)
    return scores[:B]


def weight_reduce_loss(loss, weight=None, reduction='mean'):
    if weight is not None:
        loss = loss * weight
    if reduction == 'mean':
        return jnp.mean(loss)
    if reduction == 'sum':
        return jnp.sum(loss)
    return loss


class InferenceModel:
    """JAX/Pallas re-implementation of pyiqa InferenceModel with a synthetic
    NR metric network (deterministically initialized, no checkpoint load)."""

    def __init__(self, metric_name='synthetic_nr', as_loss=False,
                 loss_weight=None, loss_reduction='mean', seed=123,
                 check_input_range=True, hidden_channels=16,
                 hw_tile_target=HW_TILE_TARGET):
        self.metric_name = metric_name
        self.metric_mode = 'NR'
        self.lower_better = False
        self.as_loss = as_loss
        self.loss_weight = loss_weight
        self.loss_reduction = loss_reduction
        self.check_input_range = check_input_range if not as_loss else False
        self.seed = seed
        self.eps = 1e-06
        self.k = 3
        self.cin = 3
        self.chid = hidden_channels
        self.k_sub = 32                      # 27 conv taps + bias tap -> 32 sublanes
        self.hw_tile_target = hw_tile_target

        # deterministic parameter init (no .pt/.pth loading)
        key = jax.random.PRNGKey(seed)
        k1, k2, k3, k4 = jax.random.split(key, 4)
        k_taps = self.k * self.k * self.cin                              # 27
        w1 = jax.random.normal(k1, (k_taps, self.chid), jnp.float32) * 0.1
        b1 = jax.random.normal(k2, (self.chid,), jnp.float32) * 0.1
        w1p = jnp.zeros((self.k_sub, self.chid), jnp.float32)
        w1p = w1p.at[:k_taps].set(w1).at[k_taps].set(b1)   # bias folded as tap 27
        self.w1t = jnp.asarray(w1p.T, jnp.bfloat16)        # (chid, 32) bf16
        self.w2 = jax.random.normal(k3, (1, self.chid), jnp.float32) * 0.1
        self.b2 = float(jax.random.normal(k4, ()) * 0.1)   # scalar folded at finalize

    def is_valid_input(self, x):
        if x is not None:
            assert isinstance(x, jnp.ndarray), 'Input must be a jnp.ndarray'
            assert x.ndim == 4, 'Input must be 4D tensor (B, C, H, W)'
            assert x.shape[1] in [1, 3], 'Input must be RGB or gray image'
            if self.check_input_range and not isinstance(x, jax.core.Tracer):
                # Single fused device->host sync; skipped entirely for as_loss
                # mode and under jit tracing so it never serializes hot paths.
                xmin, xmax = jax.device_get((jnp.min(x), jnp.max(x)))
                assert float(xmin) > -self.eps and float(xmax) < 1 + self.eps, (
                    f'Input must be normalized to [0, 1], got '
                    f'min={float(xmin):.4f}, max={float(xmax):.4f}')

    def _net(self, target_nchw):
        # NCHW -> NHWC, grayscale broadcast to 3 channels if needed
        x = jnp.transpose(target_nchw, (0, 2, 3, 1)).astype(jnp.float32)
        if x.shape[-1] == 1:
            x = jnp.tile(x, (1, 1, 1, 3))
        B, H, W, _ = x.shape
        HW = H * W
        hw128 = pl.cdiv(HW, 128) * 128
        hw_tile = min(self.hw_tile_target, hw128)          # multiple of 128
        hwp = pl.cdiv(HW, hw_tile) * hw_tile
        if B <= 8:
            b_blk, b_pad = B, B                            # single batch block
        else:
            b_blk, b_pad = 8, pl.cdiv(B, 8) * 8            # 8 images per grid step
        return _nr_forward(x, self.w1t, self.w2,
                           k=self.k, k_sub=self.k_sub, hwp=hwp, hw_tile=hw_tile,
                           b_blk=b_blk, b_pad=b_pad, hw_real=HW, b2=self.b2)

    def forward(self, target, ref=None, **kwargs):
        # TODO(synk): FID / inception_score branches and file-path (imread2tensor)
        # inputs have no clean Pallas equivalent; tensor NR/FR paths only.
        self.is_valid_input(target)
        if self.metric_mode == 'FR':
            assert ref is not None, 'Please specify reference image for Full Reference metric'
            self.is_valid_input(ref)
            output = self._net(target) - self._net(ref)    # synthetic FR combination
        else:
            output = self._net(target)
        if self.as_loss:
            if isinstance(output, tuple):
                output = output[0]
            return weight_reduce_loss(output, self.loss_weight, self.loss_reduction)
        return output

    __call__ = forward


# --------------------------------- main ---------------------------------------

if __name__ == "__main__":
    key = jax.random.PRNGKey(0)
    # B=2, C=3, H=W=16, values in [0, 1] to satisfy is_valid_input
    x = jax.random.uniform(key, (2, 3, 16, 16), dtype=jnp.float32,
                           minval=0.0, maxval=1.0)

    model = InferenceModel(metric_name='synthetic_nr', as_loss=False)
    scores = jax.block_until_ready(model(x))      # per-image quality scores (2,)
    assert scores.shape == (2,)
    assert bool(jnp.all(jnp.isfinite(scores)))

    loss_model = InferenceModel(metric_name='synthetic_nr', as_loss=True)
    loss = jax.block_until_ready(loss_model(x))   # scalar mean-reduced loss
    assert loss.shape == ()

    print("KERNEL_OK")
</pallas_src>

<mosaic_0001>
module attributes {stable_mosaic.version = 11 : i64} {
  func.func @_nr_metric_kernel(%arg0: i32, %arg1: i32, %arg2: memref<2x32x256xbf16, #tpu.memory_space<vmem>>, %arg3: memref<16x32xbf16, #tpu.memory_space<vmem>>, %arg4: memref<1x16xf32, #tpu.memory_space<vmem>>, %arg5: memref<2x128xf32, #tpu.memory_space<vmem>>, %arg6: memref<2x16xf32, #tpu.memory_space<vmem>>) attributes {dimension_semantics = [#tpu.dimension_semantics<parallel>, #tpu.dimension_semantics<arbitrary>], iteration_bounds = array<i64: 1, 1>, scalar_prefetch = 0 : i64, scratch_operands = 1 : i64, tpu.core_type = #tpu.core_type<tc>, window_params = [{transform_indices = @transform_0, window_bounds = array<i64: 2, 32, 256>}, {pipeline_mode = #tpu.pipeline_mode<synchronous>, transform_indices = @transform_1, window_bounds = array<i64: 16, 32>}, {pipeline_mode = #tpu.pipeline_mode<synchronous>, transform_indices = @transform_2, window_bounds = array<i64: 1, 16>}, {transform_indices = @transform_3, window_bounds = array<i64: 2, 128>}]} {
    %c0_i32 = arith.constant 0 : i32
    %0 = arith.cmpi eq, %arg1, %c0_i32 : i32
    %1 = arith.extui %0 : i1 to i32
    %c0_i32_0 = arith.constant 0 : i32
    %2 = arith.cmpi ne, %1, %c0_i32_0 : i32
    scf.if %2 {
      %cst_22 = arith.constant 0.000000e+00 : f32
      %31 = vector.broadcast %cst_22 : f32 to vector<2x16xf32>
      %c0_23 = arith.constant 0 : index
      %c0_24 = arith.constant 0 : index
      %32 = vector.load %arg6[%c0_23, %c0_24] : memref<2x16xf32, #tpu.memory_space<vmem>>, vector<2x16xf32>
      tpu.vector_store %arg6[%c0_23, %c0_24], %31 {strides = array<i32>} : memref<2x16xf32, #tpu.memory_space<vmem>>, vector<2x16xf32>,
    } else {
    }
    %c0 = arith.constant 0 : index
    %c0_1 = arith.constant 0 : index
    %3 = vector.load %arg3[%c0, %c0_1] : memref<16x32xbf16, #tpu.memory_space<vmem>>, vector<16x32xbf16>
    %c0_2 = arith.constant 0 : index
    %c0_3 = arith.constant 0 : index
    %c0_4 = arith.constant 0 : index
    %4 = vector.load %arg2[%c0_2, %c0_3, %c0_4] : memref<2x32x256xbf16, #tpu.memory_space<vmem>>, vector<1x32x256xbf16>
    %5 = vector.shape_cast %4 : vector<1x32x256xbf16> to vector<32x256xbf16>
    %cst = arith.constant dense<0.000000e+00> : vector<16x256xf32>
    %6 = tpu.matmul %3, %5, %cst {dimension_numbers = #tpu.dot_dimension_numbers<[1], [0], [0], [1], [0, 0, 1, 1], [], []>} : vector<16x32xbf16>, vector<32x256xbf16>, vector<16x256xf32> -> vector<16x256xf32>
    %cst_5 = arith.constant 0.000000e+00 : f32
    %7 = vector.broadcast %cst_5 : f32 to vector<16x256xf32>
    %8 = arith.maximumf %6, %7 : vector<16x256xf32>
    %c0_6 = arith.constant 0 : index
    %c0_7 = arith.constant 0 : index
    %9 = vector.load %arg6[%c0_6, %c0_7] : memref<2x16xf32, #tpu.memory_space<vmem>>, vector<1x16xf32>
    %10 = vector.shape_cast %9 : vector<1x16xf32> to vector<16xf32>
    %cst_8 = arith.constant dense<0.000000e+00> : vector<16xf32>
    %11 = vector.multi_reduction <add>, %8, %cst_8 [1] : vector<16x256xf32> to vector<16xf32>
    %12 = arith.addf %10, %11 : vector<16xf32>
    %c0_9 = arith.constant 0 : index
    %c0_10 = arith.constant 0 : index
    %13 = vector.load %arg6[%c0_9, %c0_10] : memref<2x16xf32, #tpu.memory_space<vmem>>, vector<1x16xf32>
    %14 = vector.shape_cast %13 : vector<1x16xf32> to vector<16xf32>
    %15 = vector.shape_cast %12 : vector<16xf32> to vector<1x16xf32>
    tpu.vector_store %arg6[%c0_9, %c0_10], %15 {strides = array<i32>} : memref<2x16xf32, #tpu.memory_space<vmem>>, vector<1x16xf32>,
    %c1 = arith.constant 1 : index
    %c0_11 = arith.constant 0 : index
    %c0_12 = arith.constant 0 : index
    %16 = vector.load %arg2[%c1, %c0_11, %c0_12] : memref<2x32x256xbf16, #tpu.memory_space<vmem>>, vector<1x32x256xbf16>
    %17 = vector.shape_cast %16 : vector<1x32x256xbf16> to vector<32x256xbf16>
    %cst_13 = arith.constant dense<0.000000e+00> : vector<16x256xf32>
    %18 = tpu.matmul %3, %17, %cst_13 {dimension_numbers = #tpu.dot_dimension_numbers<[1], [0], [0], [1], [0, 0, 1, 1], [], []>} : vector<16x32xbf16>, vector<32x256xbf16>, vector<16x256xf32> -> vector<16x256xf32>
    %cst_14 = arith.constant 0.000000e+00 : f32
    %19 = vector.broadcast %cst_14 : f32 to vector<16x256xf32>
    %20 = arith.maximumf %18, %19 : vector<16x256xf32>
    %c1_15 = arith.constant 1 : index
    %c0_16 = arith.constant 0 : index
    %21 = vector.load %arg6[%c1_15, %c0_16] : memref<2x16xf32, #tpu.memory_space<vmem>>, vector<1x16xf32>
    %22 = vector.shape_cast %21 : vector<1x16xf32> to vector<16xf32>
    %cst_17 = arith.constant dense<0.000000e+00> : vector<16xf32>
    %23 = vector.multi_reduction <add>, %20, %cst_17 [1] : vector<16x256xf32> to vector<16xf32>
    %24 = arith.addf %22, %23 : vector<16xf32>
    %c1_18 = arith.constant 1 : index
    %c0_19 = arith.constant 0 : index
    %25 = vector.load %arg6[%c1_18, %c0_19] : memref<2x16xf32, #tpu.memory_space<vmem>>, vector<1x16xf32>
    %26 = vector.shape_cast %25 : vector<1x16xf32> to vector<16xf32>
    %27 = vector.shape_cast %24 : vector<16xf32> to vector<1x16xf32>
    tpu.vector_store %arg6[%c1_18, %c0_19], %27 {strides = array<i32>} : memref<2x16xf32, #tpu.memory_space<vmem>>, vector<1x16xf32>,
    %c0_i32_20 = arith.constant 0 : i32
    %28 = arith.cmpi eq, %arg1, %c0_i32_20 : i32
    %29 = arith.extui %28 : i1 to i32
    %c0_i32_21 = arith.constant 0 : i32
    %30 = arith.cmpi ne, %29, %c0_i32_21 : i32
    scf.if %30 {
      %c0_22 = arith.constant 0 : index
      %c0_23 = arith.constant 0 : index
      %31 = vector.load %arg6[%c0_22, %c0_23] : memref<2x16xf32, #tpu.memory_space<vmem>>, vector<2x16xf32>
      %cst_24 = arith.constant 3.906250e-03 : f32
      %32 = vector.broadcast %cst_24 : f32 to vector<2x16xf32>
      %33 = arith.mulf %31, %32 : vector<2x16xf32>
      %c0_25 = arith.constant 0 : index
      %c0_26 = arith.constant 0 : index
      %34 = vector.load %arg4[%c0_25, %c0_26] : memref<1x16xf32, #tpu.memory_space<vmem>>, vector<1x16xf32>
      %35 = vector.broadcast %34 : vector<1x16xf32> to vector<2x16xf32>
      %36 = arith.mulf %33, %35 : vector<2x16xf32>
      %cst_27 = arith.constant dense<0.000000e+00> : vector<2xf32>
      %37 = vector.multi_reduction <add>, %36, %cst_27 [1] : vector<2x16xf32> to vector<2xf32>
      %cst_28 = arith.constant 0.242057562 : f32
      %38 = vector.broadcast %cst_28 : f32 to vector<2xf32>
      %39 = arith.addf %37, %38 : vector<2xf32>
      %40 = vector.shape_cast %39 : vector<2xf32> to vector<2x1xf32>
      %41 = vector.shape_cast %40 : vector<2x1xf32> to vector<2x1xf32>
      %42 = vector.broadcast %41 : vector<2x1xf32> to vector<2x128xf32>
      %c0_29 = arith.constant 0 : index
      %c0_30 = arith.constant 0 : index
      %43 = vector.load %arg5[%c0_29, %c0_30] : memref<2x128xf32, #tpu.memory_space<vmem>>, vector<2x128xf32>
      tpu.vector_store %arg5[%c0_29, %c0_30], %42 {strides = array<i32>} : memref<2x128xf32, #tpu.memory_space<vmem>>, vector<2x128xf32>,
    } else {
    }
    return
  }
  func.func @transform_0(%arg0: i32, %arg1: i32) -> (i32, i32, i32) {
    %c0_i32 = arith.constant 0 : i32
    %c0_i32_0 = arith.constant 0 : i32
    return %arg0, %c0_i32, %arg1 : i32, i32, i32
  }
  func.func @transform_1(%arg0: i32, %arg1: i32) -> (i32, i32) {
    %c0_i32 = arith.constant 0 : i32
    %c0_i32_0 = arith.constant 0 : i32
    %c0_i32_1 = arith.constant 0 : i32
    return %c0_i32, %c0_i32_0 : i32, i32
  }
  func.func @transform_2(%arg0: i32, %arg1: i32) -> (i32, i32) {
    %c0_i32 = arith.constant 0 : i32
    %c0_i32_0 = arith.constant 0 : i32
    %c0_i32_1 = arith.constant 0 : i32
    return %c0_i32, %c0_i32_0 : i32, i32
  }
  func.func @transform_3(%arg0: i32, %arg1: i32) -> (i32, i32) {
    %c0_i32 = arith.constant 0 : i32
    %c0_i32_0 = arith.constant 0 : i32
    return %arg0, %c0_i32 : i32, i32
  }
}

</mosaic_0001>

<llo_original>
// kernel: _nr_forward.1
$region0: #{_nr_forward.1}
  #allocation0 [shape = 'u32[]', space=smem, size = 0x4, offset = 0x4, fixed_abs, tag = 'smem constant byte address 0x4 - core index']
  #allocation1 [shape = 'u32[144,128]{1,0:T(1,128)}', space=vmem, size = 0x12000, scoped, tag = 'internal scratch']
  #allocation2 [shape = 'f32[2,16]{1,0:T(2,128)}', space=vmem, size = 0x400, scoped, tag = 'scratch operand']
  %s0 = inlined_call_operand.vmem [shape: bf16[2,32,256], index: 0, kind: input, shape index: {}]
  %s1 = inlined_call_operand.vmem [shape: bf16[16,32], index: 1, kind: input, shape index: {}]
  %s2 = inlined_call_operand.vmem [shape: f32[1,16], index: 2, kind: input, shape index: {}]
  %s3 = inlined_call_operand.vmem [shape: f32[2,128], index: 3, kind: output, shape index: {}]
  %s4 = sld [smem:[#allocation0]]
  $region30: #{_nr_forward.1} parent=0
    _
  %s6 = ssub.s32 1, %s4
  %s7 = scalar_select 0, %s6, %s4
  // Predicated region
  $region2: #{_nr_forward.1} parent=0 // pred_check
    _
  $region3: #{_nr_forward.1} parent=0 // pred_check_branch
    %9 = sbr.rel (0) target = $region5
  $region4: #{_nr_forward.1} parent=0 // pred_region
    _
  $region5: #{_nr_forward.1} parent=0 // pred_fallthru
    _
  // Predicated region
  $region6: #{_nr_forward.1} parent=0 // pred_check
    _
  $region7: #{_nr_forward.1} parent=0 // pred_check_branch
    %11 = sbr.rel (0) target = $region9
  $region8: #{_nr_forward.1} parent=0 // pred_region
    _
  $region9: #{_nr_forward.1} parent=0 // pred_fallthru
    _
  // Predicated region
  $region10: #{_nr_forward.1} parent=0 // pred_check
    _
  $region11: #{_nr_forward.1} parent=0 // pred_check_branch
    %13 = sbr.rel (0) target = $region13
  $region12: #{_nr_forward.1} parent=0 // pred_region
    _
  $region13: #{_nr_forward.1} parent=0 // pred_fallthru
    _
  %p15 = scmp.eq.s32.totalorder 0, 0
  // Predicated region
  $region14: #{_nr_forward.1} parent=0 // pred_check
    %p16 = pneg %p15
  $region15: #{_nr_forward.1} parent=0 // pred_check_branch
    %18 = sbr.rel (%p16) target = $region17
  $region16: #{_nr_forward.1} parent=0 // pred_region
    %vm19 = vcmask 123904
    %20 = vst.msk [vmem:[#allocation2] sm:$0x3] %vm19, 0.0
  $region17: #{_nr_forward.1} parent=0 // pred_fallthru
    _
  %v21 = vld [vmem:[%s1] sm:$0xf]
  %v22 = vld [vmem:[%s1 + $0x4] sm:$0xf]
  %v23 = vld [vmem:[%s0] sm:$0xff]
  %v24 = vld [vmem:[%s0 + $0x8] sm:$0xff]
  %v25 = vld [vmem:[%s0 + $0x10] sm:$0xff]
  %v26 = vld [vmem:[%s0 + $0x18] sm:$0xff]
  %v29 = vunpack.c.l.b16 %v21
  %v30 = vunpack.c.l.b16 %v22
  %v31 = vpack.c.b16 %v30, %v29
  %v36 = vunpack.c.l.b16 %v23
  %v37 = vunpack.c.h.b16 %v23
  %v38 = vunpack.c.l.b16 %v24
  %v39 = vunpack.c.h.b16 %v24
  %v40 = vunpack.c.l.b16 %v25
  %v41 = vunpack.c.h.b16 %v25
  %v42 = vunpack.c.l.b16 %v26
  %v43 = vunpack.c.h.b16 %v26
  %v44 = vpack.c.b16 %v38, %v36
  %v45 = vpack.c.b16 %v39, %v37
  %v46 = vpack.c.b16 %v42, %v40
  %v47 = vpack.c.b16 %v43, %v41
  %vm52 = vcmask 261120
  %v54 = vsel %vm52, %v31, 0
  %56 = vmatprep.subr.bf16.mxu0 0
  %57 = vmatpush1.bf16.msra.mxu0 0
  %58 = vmatprep.subr.bf16.mxu0 0
  %59 = vmatpush1.bf16.msra.mxu0 0
  %60 = vmatprep.subr.bf16.mxu0 0
  %61 = vmatpush1.bf16.msra.mxu0 0
  %62 = vmatprep.subr.bf16.mxu0 0
  %63 = vmatpush1.bf16.msra.mxu0 0
  %64 = vmatprep.subr.bf16.mxu0 0
  %65 = vmatpush1.bf16.msra.mxu0 0
  %66 = vmatprep.subr.bf16.mxu0 0
  %67 = vmatpush1.bf16.msra.mxu0 0
  %68 = vmatprep.subr.bf16.mxu0 %v47
  %69 = vmatpush1.bf16.msra.mxu0 %v46
  %70 = vmatprep.subr.bf16.mxu0 %v45
  %71 = vmatpush1.bf16.msra.mxu0 %v44
  %72 = vmatprep.subr.bf16.mxu0 0
  %73 = vmatpush2.bf16.msra.mxu0 0
  %74 = vmatprep.subr.bf16.mxu0 0
  %75 = vmatpush2.bf16.msra.mxu0 0
  %76 = vmatprep.subr.bf16.mxu0 0
  %77 = vmatpush2.bf16.msra.mxu0 0
  %78 = vmatprep.subr.bf16.mxu0 0
  %79 = vmatpush2.bf16.msra.mxu0 0
  %80 = vmatprep.subr.bf16.mxu0 0
  %81 = vmatpush2.bf16.msra.mxu0 0
  %82 = vmatprep.subr.bf16.mxu0 0
  %83 = vmatpush2.bf16.msra.mxu0 0
  %84 = vmatprep.subr.bf16.mxu0 0
  %85 = vmatpush2.bf16.msra.mxu0 0
  %86 = vmatprep.subr.bf16.mxu0 0
  %87 = vmatpush2.bf16.msra.mxu0 0
  %88 = vmatprep.mubr.bf16.mxu0 0
  %89 = vmatmul.mubr.bf16.gmra.mxu0 %v54
  %v90 = vpop.f32.mrf.mxu0
  %v91 = vadd.f32 0.0, %v90
  %v92 = vpop.f32.mrf.mxu0
  %v93 = vadd.f32 0.0, %v92
  %v94 = vpop.f32.mrf.mxu0
  %v95 = vadd.f32 0.0, %v94
  %v96 = vpop.f32.mrf.mxu0
  %v97 = vadd.f32 0.0, %v96
  %98 = vdwg.mxu0
  %v99 = vmax.f32 %v91, 0.0
  %v100 = vmax.f32 %v93, 0.0
  %v101 = vmax.f32 %v95, 0.0
  %v102 = vmax.f32 %v97, 0.0
  %v103 = vld [vmem:[#allocation2] sm:$0x1]
  %v104 = vadd.f32 %v99, %v100
  %105 = vadd.xlane.f32.xlu0 %v104
  %v106 = vpop.xlane.xlu0 %105
  %v107 = vadd.f32 %v101, %v102
  %108 = vadd.xlane.f32.xlu0 %v107
  %v109 = vpop.xlane.xlu0 %108
  %v112 = vlaneseq
  %v113 = vand.u32 %v112, 127
  %v114 = vlaneseq
  %v115 = vshrl.u32 %v114, 7
  %v116 = vsub.s32 %v113, %v115
  %v117 = vrot.slane %v106, %v116
  %v118 = vadd.s32 %v113, 4294967288
  %v119 = vlaneseq
  %v120 = vshrl.u32 %v119, 7
  %v121 = vsub.s32 %v118, %v120
  %v122 = vrot.slane %v109, %v121
  %vm123 = vcmask 130112
  %v124 = vsel %vm123, %v122, %v117
  %v126 = vadd.f32 %v103, %v124
  %vm127 = vcmask 122880
  %128 = vst.msk [vmem:[#allocation2] sm:$0x1] %vm127, %v126
  %s129 = scalar_lea.vmem %s0, 32
  %v130 = vld [vmem:[%s129] sm:$0xff]
  %v131 = vld [vmem:[%s129 + $0x8] sm:$0xff]
  %v132 = vld [vmem:[%s129 + $0x10] sm:$0xff]
  %v133 = vld [vmem:[%s129 + $0x18] sm:$0xff]
  %v138 = vunpack.c.l.b16 %v130
  %v139 = vunpack.c.h.b16 %v130
  %v140 = vunpack.c.l.b16 %v131
  %v141 = vunpack.c.h.b16 %v131
  %v142 = vunpack.c.l.b16 %v132
  %v143 = vunpack.c.h.b16 %v132
  %v144 = vunpack.c.l.b16 %v133
  %v145 = vunpack.c.h.b16 %v133
  %v146 = vpack.c.b16 %v140, %v138
  %v147 = vpack.c.b16 %v141, %v139
  %v148 = vpack.c.b16 %v144, %v142
  %v149 = vpack.c.b16 %v145, %v143
  %154 = vmatprep.subr.bf16.mxu0 0
  %155 = vmatpush1.bf16.msra.mxu0 0
  %156 = vmatprep.subr.bf16.mxu0 0
  %157 = vmatpush1.bf16.msra.mxu0 0
  %158 = vmatprep.subr.bf16.mxu0 0
  %159 = vmatpush1.bf16.msra.mxu0 0
  %160 = vmatprep.subr.bf16.mxu0 0
  %161 = vmatpush1.bf16.msra.mxu0 0
  %162 = vmatprep.subr.bf16.mxu0 0
  %163 = vmatpush1.bf16.msra.mxu0 0
  %164 = vmatprep.subr.bf16.mxu0 0
  %165 = vmatpush1.bf16.msra.mxu0 0
  %166 = vmatprep.subr.bf16.mxu0 %v149
  %167 = vmatpush1.bf16.msra.mxu0 %v148
  %168 = vmatprep.subr.bf16.mxu0 %v147
  %169 = vmatpush1.bf16.msra.mxu0 %v146
  %170 = vmatprep.subr.bf16.mxu0 0
  %171 = vmatpush2.bf16.msra.mxu0 0
  %172 = vmatprep.subr.bf16.mxu0 0
  %173 = vmatpush2.bf16.msra.mxu0 0
  %174 = vmatprep.subr.bf16.mxu0 0
  %175 = vmatpush2.bf16.msra.mxu0 0
  %176 = vmatprep.subr.bf16.mxu0 0
  %177 = vmatpush2.bf16.msra.mxu0 0
  %178 = vmatprep.subr.bf16.mxu0 0
  %179 = vmatpush2.bf16.msra.mxu0 0
  %180 = vmatprep.subr.bf16.mxu0 0
  %181 = vmatpush2.bf16.msra.mxu0 0
  %182 = vmatprep.subr.bf16.mxu0 0
  %183 = vmatpush2.bf16.msra.mxu0 0
  %184 = vmatprep.subr.bf16.mxu0 0
  %185 = vmatpush2.bf16.msra.mxu0 0
  %186 = vmatprep.mubr.bf16.mxu0 0
  %187 = vmatmul.mubr.bf16.gmra.mxu0 %v54
  %v188 = vpop.f32.mrf.mxu0
  %v189 = vadd.f32 0.0, %v188
  %v190 = vpop.f32.mrf.mxu0
  %v191 = vadd.f32 0.0, %v190
  %v192 = vpop.f32.mrf.mxu0
  %v193 = vadd.f32 0.0, %v192
  %v194 = vpop.f32.mrf.mxu0
  %v195 = vadd.f32 0.0, %v194
  %196 = vdwg.mxu0
  %v197 = vmax.f32 %v189, 0.0
  %v198 = vmax.f32 %v191, 0.0
  %v199 = vmax.f32 %v193, 0.0
  %v200 = vmax.f32 %v195, 0.0
  %v201 = vld [vmem:[#allocation2 + $0x1] sm:$0x1]
  %v202 = vadd.f32 %v197, %v198
  %203 = vadd.xlane.f32.xlu0 %v202
  %v204 = vpop.xlane.xlu0 %203
  %v205 = vadd.f32 %v199, %v200
  %206 = vadd.xlane.f32.xlu0 %v205
  %v207 = vpop.xlane.xlu0 %206
  %v210 = vlaneseq
  %v211 = vshrl.u32 %v210, 7
  %v212 = vsub.s32 %v113, %v211
  %v213 = vrot.slane %v204, %v212
  %v214 = vlaneseq
  %v215 = vshrl.u32 %v214, 7
  %v216 = vsub.s32 %v118, %v215
  %v217 = vrot.slane %v207, %v216
  %v218 = vsel %vm123, %v217, %v213
  %v220 = vadd.f32 %v201, %v218
  %221 = vst.msk [vmem:[#allocation2 + $0x1] sm:$0x1] %vm127, %v220
  // Predicated region
  $region18: #{_nr_forward.1} parent=0 // pred_check
    %p222 = pneg %p15
  $region19: #{_nr_forward.1} parent=0 // pred_check_branch
    %224 = sbr.rel (%p222) target = $region21
  $region20: #{_nr_forward.1} parent=0 // pred_region
    %v225 = vld [vmem:[#allocation2] sm:$0x3]
    %v226 = vmul.f32 %v225, 0.00390625
    %v227 = vld [vmem:[%s2] sm:$0x1]
    %v229 = vlaneseq
    %v230 = vshrl.u32 %v229, 7
    %v231 = vsub.s32 0, %v230
    %v232 = vrot.slane %v227, %v231
    %v234 = vmul.f32 %v226, %v232
    %vm235 = vcmask 123904
    %v236 = vsel %vm235, %v234, 0.0
    %237 = vadd.xlane.f32.xlu0 %v236
    %v238 = vpop.xlane.xlu0 %237
    %v239 = vadd.f32 %v238, 0.24205756
    %240 = vst [vmem:[%s3] sm:$0x3] %v239
  $region21: #{_nr_forward.1} parent=0 // pred_fallthru
    _
  // Predicated region
  $region22: #{_nr_forward.1} parent=0 // pred_check
    _
  $region23: #{_nr_forward.1} parent=0 // pred_check_branch
    %242 = sbr.rel (0) target = $region25
  $region24: #{_nr_forward.1} parent=0 // pred_region
    _
  $region25: #{_nr_forward.1} parent=0 // pred_fallthru
    _
  // Predicated region
  $region26: #{_nr_forward.1} parent=0 // pred_check
    _
  $region27: #{_nr_forward.1} parent=0 // pred_check_branch
    %244 = sbr.rel (0) target = $region29
  $region28: #{_nr_forward.1} parent=0 // pred_region
    _
  $region29: #{_nr_forward.1} parent=0 // pred_fallthru
    _

</llo_original>
